<compile_context>
chip_gen: v7x
topology: tpu7x:2x2x1
jax: 0.10.0
libtpu: 0.0.40
codegen_flags: <defaults>
</compile_context>

<pallas_src>
import functools

import jax
import jax.numpy as jnp
from jax.experimental import pallas as pl
from jax.experimental.pallas import tpu as pltpu


_TILE_BUDGET = 6 * 1024 * 1024  # target per-tile working set (review: 2-8 MiB)


# --------------------------------------------------------------------------
# Kernels
# --------------------------------------------------------------------------
def _kernel_small_cout(x_ref, w_ref, b_ref, o_ref):
    # Transposed formulation (Cout on sublanes, spatial rows on lanes).
    # x_ref: (1, C9, tr)   bf16   C9 = KH*KW*Cin (full im2col)
    # w_ref: (Cout_p, C9)  bf16   BN scale folded in, Cout padded to mult of 8
    # b_ref: (Cout_p, 1)   f32    folded BN bias
    # o_ref: (1, Cout_p, tr) bf16 lane-dense (tr % 128 == 0 or full extent)
    acc = jnp.dot(w_ref[...], x_ref[0], preferred_element_type=jnp.float32)
    o_ref[0] = jnp.maximum(acc + b_ref[...], 0.0).astype(o_ref.dtype)


def _kernel_big_cout(x_ref, w_ref, b_ref, o_ref):
    # Standard formulation (rows on sublanes, Cout on lanes), full im2col.
    # x_ref: (1, rows, C9) bf16; w_ref: (C9, Cp) bf16; b_ref: (1, Cp) f32
    acc = jnp.dot(x_ref[0], w_ref[...], preferred_element_type=jnp.float32)
    o_ref[0] = jnp.maximum(acc + b_ref[...], 0.0).astype(o_ref.dtype)


def _kernel_kw_roll(x_ref, w_ref, b_ref, o_ref):
    # Large-Cin fallback: KH folded into the contraction, KW taps via rolls of
    # the *small bf16 input slab* (not the f32 tap) -- XLU slot, low vreg cost.
    # rows = tile_h * Wp; wrapped rows land in discarded wp >= W_out columns.
    rows = x_ref.shape[1]
    kw_taps = w_ref.shape[0]
    x2 = x_ref[0]
    acc = jnp.dot(x2, w_ref[0], preferred_element_type=jnp.float32)
    for kw in range(1, kw_taps):
        x_sh = pltpu.roll(x2, rows - kw, axis=0)
        acc = acc + jnp.dot(x_sh, w_ref[kw], preferred_element_type=jnp.float32)
    o_ref[0] = jnp.maximum(acc + b_ref[...], 0.0).astype(o_ref.dtype)


# --------------------------------------------------------------------------
# Tiling / config helpers (all trace-time Python)
# --------------------------------------------------------------------------
def _ceil_to(x, m):
    return ((x + m - 1) // m) * m


def _round_cout(cout):
    # v6e/v7x MXU is 256 wide: use 256-granular output blocks once Cout >= 256.
    mult = 256 if cout >= 256 else 128
    return _ceil_to(cout, mult)


def _vmem_limit_bytes():
    # v5e/v6e: 128 MiB physical VMEM -> raise the scoped limit so multi-MiB
    # tiles double-buffer.  v7x (64 MiB) / unknown: stay conservative.
    try:
        kind = jax.devices()[0].device_kind.lower()
    except Exception:
        kind = ""
    if "v5" in kind or "v6" in kind:
        return 64 * 1024 * 1024
    return 48 * 1024 * 1024


def _aligned_divisors(total, align):
    cands = [total]
    for t in range(align, total, align):
        if total % t == 0:
            cands.append(t)
    return cands


def _choose_tile(n_batch, total_rows, candidates, bytes_per_row):
    """Largest candidate row-tile within the working-set budget; prefer an even
    total program count (v7x megacore) when it costs at most 2x tile size."""
    cands = sorted(set(candidates))
    fits = [t for t in cands if t * bytes_per_row <= _TILE_BUDGET] or [cands[0]]
    best = max(fits)
    if (n_batch * (total_rows // best)) % 2 == 1:
        even = [t for t in fits
                if (n_batch * (total_rows // t)) % 2 == 0 and 2 * t >= best]
        if even:
            best = max(even)
    return best


def _pick_tile_h(n_batch, h_out, w_row, bytes_per_row):
    # Roll path: tiles must be whole multiples of Wp rows; prefer 16-aligned
    # flattened row counts (bf16 packed sublanes), fall back to 8-aligned.
    divs = [t for t in range(1, h_out + 1) if h_out % t == 0]
    cands = ([t for t in divs if (t * w_row) % 16 == 0]
             or [t for t in divs if (t * w_row) % 8 == 0]
             or [])
    if h_out not in cands:
        cands.append(h_out)
    rows = _choose_tile(n_batch, h_out * w_row,
                        [t * w_row for t in cands], bytes_per_row)
    return rows // w_row


# --------------------------------------------------------------------------
# Path runners (wrapper-side layout plumbing is XLA glue)
# --------------------------------------------------------------------------
def _run_transposed(patches, w_flat, bias, N, Cout, C9, R, H_out, W_out,
                    out_dtype, vmem_limit):
    # Small-Cout: output (N, Cout_p, R) with rows on lanes -> no Cp=128
    # inflation and no final NCHW transpose.
    Cout_p = _ceil_to(Cout, 8)
    x_t = jnp.transpose(patches, (0, 3, 1, 2)).reshape(N, C9, R).astype(jnp.bfloat16)
    w_t = jnp.pad(w_flat, ((0, Cout_p - Cout), (0, 0))).astype(jnp.bfloat16)
    b_t = jnp.pad(bias, (0, Cout_p - Cout)).reshape(Cout_p, 1)

    bytes_per_row = 4 * C9 + 8 * Cout_p     # 2x bf16 x, 2x bf16 out, f32 acc
    tr = _choose_tile(N, R, _aligned_divisors(R, 128), bytes_per_row)
    grid = (N, R // tr)

    out = pl.pallas_call(
        _kernel_small_cout,
        out_shape=jax.ShapeDtypeStruct((N, Cout_p, R), jnp.bfloat16),
        grid_spec=pltpu.PrefetchScalarGridSpec(
            num_scalar_prefetch=0,
            grid=grid,
            in_specs=[
                pl.BlockSpec((1, C9, tr), lambda n, i: (n, 0, i)),
                pl.BlockSpec((Cout_p, C9), lambda n, i: (0, 0)),
                pl.BlockSpec((Cout_p, 1), lambda n, i: (0, 0)),
            ],
            out_specs=pl.BlockSpec((1, Cout_p, tr), lambda n, i: (n, 0, i)),
        ),
        compiler_params=pltpu.CompilerParams(
            dimension_semantics=("parallel", "parallel"),
            vmem_limit_bytes=vmem_limit),
    )(x_t, w_t, b_t)

    out = out.reshape(N, Cout_p, H_out, W_out)[:, :Cout]
    return out.astype(out_dtype)


def _run_normal(patches, w_flat, bias, N, Cout, C9, R, H_out, W_out,
                out_dtype, vmem_limit):
    Cp = _round_cout(Cout)
    x_flat = patches.reshape(N, R, C9).astype(jnp.bfloat16)
    w_n = jnp.pad(w_flat.T, ((0, 0), (0, Cp - Cout))).astype(jnp.bfloat16)  # (C9, Cp)
    b_n = jnp.pad(bias, (0, Cp - Cout)).reshape(1, Cp)

    bytes_per_row = 4 * C9 + 8 * Cp
    rows = _choose_tile(N, R, _aligned_divisors(R, 16), bytes_per_row)
    grid = (N, R // rows)

    out = pl.pallas_call(
        _kernel_big_cout,
        out_shape=jax.ShapeDtypeStruct((N, R, Cp), jnp.bfloat16),
        grid_spec=pltpu.PrefetchScalarGridSpec(
            num_scalar_prefetch=0,
            grid=grid,
            in_specs=[
                # NOTE(v5e): if xprof shows exposed activation DMA, add
                # pipeline_mode=pl.Buffered(3) on this spec.
                pl.BlockSpec((1, rows, C9), lambda n, i: (n, i, 0)),
                pl.BlockSpec((C9, Cp), lambda n, i: (0, 0)),
                pl.BlockSpec((1, Cp), lambda n, i: (0, 0)),
            ],
            out_specs=pl.BlockSpec((1, rows, Cp), lambda n, i: (n, i, 0)),
        ),
        compiler_params=pltpu.CompilerParams(
            dimension_semantics=("parallel", "parallel"),
            vmem_limit_bytes=vmem_limit),
    )(x_flat, w_n, b_n)

    out = out.reshape(N, H_out, W_out, Cp)[..., :Cout]
    return jnp.transpose(out, (0, 3, 1, 2)).astype(out_dtype)


def _run_roll(x_pad, weight, inv, bias, N, Cin, Cout, KH, KW,
              H_out, W_out, Wp, out_dtype, vmem_limit):
    # The roll-wrap trick is exact only because wrapped rows map to the
    # discarded right-padding columns (stride 1 => Wp - W_out == KW - 1).
    assert Wp - W_out == KW - 1, "roll-wrap trick requires stride-1 layout"
    Cp = _round_cout(Cout)
    C3 = KH * Cin
    x_stack = jnp.concatenate(
        [x_pad[:, kh:kh + H_out, :, :] for kh in range(KH)], axis=-1)  # (N,Hout,Wp,C3)
    x_flat = x_stack.reshape(N, H_out * Wp, C3).astype(jnp.bfloat16)

    w = jnp.transpose(weight, (2, 3, 1, 0)) * inv                      # (KH,KW,Cin,Cout)
    w2 = jnp.transpose(w, (1, 0, 2, 3)).reshape(KW, C3, Cout)
    w2 = jnp.pad(w2, ((0, 0), (0, 0), (0, Cp - Cout))).astype(jnp.bfloat16)
    b2 = jnp.pad(bias, (0, Cp - Cout)).reshape(1, Cp)

    # TODO(synk): for KH*Cin >= 128 a halo-block (no KH fold) formulation plus a
    # Cout grid axis (v7x, weights > a few MiB) would cut HBM traffic further.
    bytes_per_row = 6 * C3 + 8 * Cp
    tile_h = _pick_tile_h(N, H_out, Wp, bytes_per_row)
    rows = tile_h * Wp
    grid = (N, H_out // tile_h)

    out = pl.pallas_call(
        _kernel_kw_roll,
        out_shape=jax.ShapeDtypeStruct((N, H_out * Wp, Cp), jnp.bfloat16),
        grid_spec=pltpu.PrefetchScalarGridSpec(
            num_scalar_prefetch=0,
            grid=grid,
            in_specs=[
                pl.BlockSpec((1, rows, C3), lambda n, i: (n, i, 0)),
                pl.BlockSpec((KW, C3, Cp), lambda n, i: (0, 0, 0)),
                pl.BlockSpec((1, Cp), lambda n, i: (0, 0)),
            ],
            out_specs=pl.BlockSpec((1, rows, Cp), lambda n, i: (n, i, 0)),
        ),
        compiler_params=pltpu.CompilerParams(
            dimension_semantics=("parallel", "parallel"),
            vmem_limit_bytes=vmem_limit),
    )(x_flat, w2, b2)

    out = out.reshape(N, H_out, Wp, Cp)[:, :, :W_out, :Cout]
    return jnp.transpose(out, (0, 3, 1, 2)).astype(out_dtype)


# --------------------------------------------------------------------------
# Public entry point
# --------------------------------------------------------------------------
@functools.partial(jax.jit, static_argnames=("padding",))
def conv_bn_relu(x_nchw, weight, gamma, beta, running_mean, running_var,
                 padding=1, eps=1e-5):
    """Eval-mode `F.relu(bn(conv(x)))` for stride=1 Conv2d (no bias).

    x_nchw: (N, Cin, H, W); weight: (Cout, Cin, KH, KW) (PyTorch layout).
    """
    # TODO(synk): only stride=1, dilation=1, groups=1 (the module's defaults)
    # and inference-mode BN (running stats) are implemented.
    N, Cin, H, W = x_nchw.shape
    Cout, Cin_w, KH, KW = weight.shape
    assert Cin_w == Cin, "groups != 1 not supported"

    Hp, Wp = H + 2 * padding, W + 2 * padding
    H_out, W_out = Hp - KH + 1, Wp - KW + 1
    assert H_out > 0 and W_out > 0, "invalid padding / kernel size"

    out_dtype = x_nchw.dtype
    inv = gamma / jnp.sqrt(running_var + eps)                       # (Cout,)
    bias = (beta - running_mean * inv).astype(jnp.float32)

    # Wrapper-side layout plumbing (XLA glue): NHWC + zero padding.
    x_nhwc = jnp.transpose(x_nchw, (0, 2, 3, 1))
    x_pad = jnp.pad(x_nhwc, ((0, 0), (padding, padding), (padding, padding), (0, 0)))

    vmem_limit = _vmem_limit_bytes()
    C9 = KH * KW * Cin

    if C9 <= 128:
        # Full im2col: both kernel taps folded into the contraction, so the
        # kernel is a single matmul (no rolls, no multi-pass accumulator).
        patches = jnp.concatenate(
            [x_pad[:, kh:kh + H_out, kw:kw + W_out, :]
             for kh in range(KH) for kw in range(KW)], axis=-1)     # (N,Hout,Wout,C9)
        R = H_out * W_out
        w_flat = (jnp.transpose(weight, (0, 2, 3, 1)).reshape(Cout, C9)
                  * inv[:, None])                                    # (Cout, C9)
        # TODO(synk): on v7x, fp8(e4m3) weights (bf16 x fp8 MXU) could halve
        # weight DMA for large Cin*Cout; not applied (accuracy-dependent).
        if Cout <= 32:
            return _run_transposed(patches, w_flat, bias, N, Cout, C9, R,
                                   H_out, W_out, out_dtype, vmem_limit)
        return _run_normal(patches, w_flat, bias, N, Cout, C9, R,
                           H_out, W_out, out_dtype, vmem_limit)

    # Large-Cin fallback: KH folded into the contraction, KW via bf16 rolls.
    return _run_roll(x_pad, weight, inv, bias, N, Cin, Cout, KH, KW,
                     H_out, W_out, Wp, out_dtype, vmem_limit)


# --------------------------------------------------------------------------
# Reference + self-test
# --------------------------------------------------------------------------
def _reference(x_nchw, weight, gamma, beta, mean, var, padding=1, eps=1e-5):
    y = jax.lax.conv_general_dilated(
        x_nchw, weight, window_strides=(1, 1),
        padding=[(padding, padding), (padding, padding)],
        dimension_numbers=("NCHW", "OIHW", "NCHW"),
        precision=jax.lax.Precision.HIGHEST)
    inv = gamma / jnp.sqrt(var + eps)
    y = y * inv[None, :, None, None] + (beta - mean * inv)[None, :, None, None]
    return jnp.maximum(y, 0.0)


if __name__ == "__main__":
    key = jax.random.PRNGKey(0)
    k_x, k_w, k_g, k_b, k_m, k_v = jax.random.split(key, 6)

    N, Cin, Cout, H, W, KS = 2, 4, 8, 16, 16, 3

    x = jax.random.normal(k_x, (N, Cin, H, W), jnp.float32)
    weight = jax.random.normal(k_w, (Cout, Cin, KS, KS), jnp.float32) * 0.1
    gamma = 1.0 + 0.1 * jax.random.normal(k_g, (Cout,), jnp.float32)
    beta = 0.1 * jax.random.normal(k_b, (Cout,), jnp.float32)
    running_mean = 0.1 * jax.random.normal(k_m, (Cout,), jnp.float32)
    running_var = jnp.abs(jax.random.normal(k_v, (Cout,), jnp.float32)) + 0.5

    out = conv_bn_relu(x, weight, gamma, beta, running_mean, running_var)
    out = jax.block_until_ready(out)

    ref = _reference(x, weight, gamma, beta, running_mean, running_var)
    assert out.shape == (N, Cout, H, W), out.shape
    # Tolerance reflects bf16 MXU inputs and bf16 store; accumulation and the
    # BN/ReLU epilogue stay in f32.
    assert jnp.allclose(out, ref, atol=5e-2, rtol=5e-2), float(
        jnp.max(jnp.abs(out - ref)))

    print("KERNEL_OK")
</pallas_src>

<mosaic_0001>
module attributes {stable_mosaic.version = 11 : i64} {
  func.func @_kernel_small_cout(%arg0: i32, %arg1: i32, %arg2: memref<1x36x256xbf16, #tpu.memory_space<vmem>>, %arg3: memref<8x36xbf16, #tpu.memory_space<vmem>>, %arg4: memref<8x1xf32, #tpu.memory_space<vmem>>, %arg5: memref<1x8x256xbf16, #tpu.memory_space<vmem>>) attributes {dimension_semantics = [#tpu.dimension_semantics<parallel>, #tpu.dimension_semantics<parallel>], iteration_bounds = array<i64: 2, 1>, scalar_prefetch = 0 : i64, scratch_operands = 0 : i64, tpu.core_type = #tpu.core_type<tc>, window_params = [{transform_indices = @transform_0, window_bounds = array<i64: 1, 36, 256>}, {pipeline_mode = #tpu.pipeline_mode<synchronous>, transform_indices = @transform_1, window_bounds = array<i64: 8, 36>}, {pipeline_mode = #tpu.pipeline_mode<synchronous>, transform_indices = @transform_2, window_bounds = array<i64: 8, 1>}, {transform_indices = @transform_3, window_bounds = array<i64: 1, 8, 256>}]} {
    %c0 = arith.constant 0 : index
    %c0_0 = arith.constant 0 : index
    %0 = vector.load %arg3[%c0, %c0_0] : memref<8x36xbf16, #tpu.memory_space<vmem>>, vector<8x36xbf16>
    %c0_1 = arith.constant 0 : index
    %c0_2 = arith.constant 0 : index
    %c0_3 = arith.constant 0 : index
    %1 = vector.load %arg2[%c0_1, %c0_2, %c0_3] : memref<1x36x256xbf16, #tpu.memory_space<vmem>>, vector<1x36x256xbf16>
    %2 = vector.shape_cast %1 : vector<1x36x256xbf16> to vector<36x256xbf16>
    %cst = arith.constant dense<0.000000e+00> : vector<8x256xf32>
    %3 = tpu.matmul %0, %2, %cst {dimension_numbers = #tpu.dot_dimension_numbers<[1], [0], [0], [1], [0, 0, 1, 1], [], []>} : vector<8x36xbf16>, vector<36x256xbf16>, vector<8x256xf32> -> vector<8x256xf32>
    %c0_4 = arith.constant 0 : index
    %c0_5 = arith.constant 0 : index
    %4 = vector.load %arg4[%c0_4, %c0_5] : memref<8x1xf32, #tpu.memory_space<vmem>>, vector<8x1xf32>
    %5 = vector.broadcast %4 : vector<8x1xf32> to vector<8x256xf32>
    %6 = arith.addf %3, %5 : vector<8x256xf32>
    %cst_6 = arith.constant 0.000000e+00 : f32
    %7 = vector.broadcast %cst_6 : f32 to vector<8x256xf32>
    %8 = arith.maximumf %6, %7 : vector<8x256xf32>
    %9 = arith.truncf %8 : vector<8x256xf32> to vector<8x256xbf16>
    %c0_7 = arith.constant 0 : index
    %c0_8 = arith.constant 0 : index
    %c0_9 = arith.constant 0 : index
    %10 = vector.load %arg5[%c0_7, %c0_8, %c0_9] : memref<1x8x256xbf16, #tpu.memory_space<vmem>>, vector<1x8x256xbf16>
    %11 = vector.shape_cast %10 : vector<1x8x256xbf16> to vector<8x256xbf16>
    %12 = vector.shape_cast %9 : vector<8x256xbf16> to vector<1x8x256xbf16>
    tpu.vector_store %arg5[%c0_7, %c0_8, %c0_9], %12 {strides = array<i32>} : memref<1x8x256xbf16, #tpu.memory_space<vmem>>, vector<1x8x256xbf16>,
    return
  }
  func.func @transform_0(%arg0: i32, %arg1: i32) -> (i32, i32, i32) {
    %c0_i32 = arith.constant 0 : i32
    %c0_i32_0 = arith.constant 0 : i32
    return %arg0, %c0_i32, %arg1 : i32, i32, i32
  }
  func.func @transform_1(%arg0: i32, %arg1: i32) -> (i32, i32) {
    %c0_i32 = arith.constant 0 : i32
    %c0_i32_0 = arith.constant 0 : i32
    %c0_i32_1 = arith.constant 0 : i32
    return %c0_i32, %c0_i32_0 : i32, i32
  }
  func.func @transform_2(%arg0: i32, %arg1: i32) -> (i32, i32) {
    %c0_i32 = arith.constant 0 : i32
    %c0_i32_0 = arith.constant 0 : i32
    %c0_i32_1 = arith.constant 0 : i32
    return %c0_i32, %c0_i32_0 : i32, i32
  }
  func.func @transform_3(%arg0: i32, %arg1: i32) -> (i32, i32, i32) {
    %c0_i32 = arith.constant 0 : i32
    %c0_i32_0 = arith.constant 0 : i32
    return %arg0, %c0_i32, %arg1 : i32, i32, i32
  }
}

</mosaic_0001>

<llo_original>
// kernel: conv_bn_relu.1
$region0: #{conv_bn_relu.1}
  #allocation0 [shape = 'u32[]', space=smem, size = 0x4, offset = 0x4, fixed_abs, tag = 'smem constant byte address 0x4 - core index']
  #allocation1 [shape = 'u32[144,128]{1,0:T(1,128)}', space=vmem, size = 0x12000, scoped, tag = 'internal scratch']
  %s0 = inlined_call_operand.vmem [shape: bf16[2,36,256], index: 0, kind: input, shape index: {}]
  %s1 = inlined_call_operand.vmem [shape: bf16[8,36], index: 1, kind: input, shape index: {}]
  %s2 = inlined_call_operand.vmem [shape: f32[8,1], index: 2, kind: input, shape index: {}]
  %s3 = inlined_call_operand.vmem [shape: bf16[2,8,256], index: 3, kind: output, shape index: {}]
  %s4 = sld [smem:[#allocation0]]
  $region45: #{conv_bn_relu.1} parent=0
    _
  %s6 = ssub.s32 1, %s4
  %s7 = scalar_select 0, %s6, %s4
  loop: start=0, step=1, limit=4
  $region2: #{conv_bn_relu.1} parent=0 // loop_pre_header
    _
  $region3: #{conv_bn_relu.1} parent=0 // loop_header
    %s9 = sphi 0, %s13
    %p10 = scmp.ge.s32.totalorder %s9, 4
    %s16 = sphi 0, %s28
    %s17 = sphi 0, %s24
    %s18 = sphi 0, %s16
    %s19 = sphi 0, %s17
    %s20 = sphi 0, %s18
    %s21 = sphi 0, %s19
    %s33 = sphi 0, %s35
    %s36 = sphi 0, %s33
    %s37 = sphi 0, %s36
    %s53 = sphi 0, %s37
    %s57 = sphi 0, %s57
    %s59 = sphi 0, %s57
    %s60 = sphi 0, %s59
    %s74 = sphi 0, %s60
    %s78 = sphi 0, %s78
    %s80 = sphi 0, %s78
    %s81 = sphi 0, %s80
    %s95 = sphi 0, %s81
    %s103 = sphi 0, %s105
    %s106 = sphi 0, %s103
    %s107 = sphi 0, %s106
    %s123 = sphi 0, %s107
  $region4: #{conv_bn_relu.1} parent=0 // loop_header_branch
    %12 = sbr.rel (%p10) target = $region8
  $region5: #{conv_bn_relu.1} parent=0 // loop_body
    %s14 = ssub.s32 %s9, 1
    %s15 = ssub.s32 %s9, 2
    %s22 = sadd.s32 1, %s17
    %p23 = scmp.ge.s32.totalorder %s22, 1
    %s24 = scalar_select %p23, 0, %s22
    %s25 = sadd.s32 1, %s16
    %s26 = scalar_select %p23, %s25, %s16
    %p27 = scmp.ge.s32.totalorder %s26, 2
    %s28 = scalar_select %p27, 0, %s26
    %s29 = ssub.s32 %s16, %s28
    %s30 = ssub.s32 %s17, %s24
    %s31 = sor.u32 %s29, %s30
    %p32 = scmp.eq.s32.totalorder %s31, 0
    %s34 = sadd.s32 %s33, 1
    %s35 = scalar_select %p32, %s33, %s34
    %p38 = pneg %p32
    %p39 = scmp.eq.s32.totalorder %s9, 1
    %p40 = por %p38, %p39
    %p41 = scmp.ne.s32.totalorder %s33, %s36
    %p42 = scmp.eq.s32.totalorder %s9, 0
    %p43 = por %p41, %p42
    %p44 = scmp.ne.s32.totalorder %s33, %s36
    %p45 = scmp.eq.s32.totalorder %s14, 1
    %p46 = por %p44, %p45
    %p47 = scmp.ne.s32.totalorder %s36, %s37
    %p48 = scmp.eq.s32.totalorder %s14, 0
    %p49 = por %p47, %p48
    %p50 = scmp.ne.s32.totalorder %s36, %s37
    %p51 = scmp.eq.s32.totalorder %s15, 1
    %p52 = por %p50, %p51
    %p54 = scmp.ne.s32.totalorder %s37, %s53
    %p55 = scmp.eq.s32.totalorder %s15, 0
    %p56 = por %p54, %p55
    %s58 = sadd.s32 %s57, 1
    %p61 = scmp.eq.s32.totalorder %s9, 1
    %p62 = scmp.ne.s32.totalorder %s57, %s59
    %p63 = scmp.eq.s32.totalorder %s9, 0
    %p64 = por %p62, %p63
    %p65 = scmp.ne.s32.totalorder %s57, %s59
    %p66 = scmp.eq.s32.totalorder %s14, 1
    %p67 = por %p65, %p66
    %p68 = scmp.ne.s32.totalorder %s59, %s60
    %p69 = scmp.eq.s32.totalorder %s14, 0
    %p70 = por %p68, %p69
    %p71 = scmp.ne.s32.totalorder %s59, %s60
    %p72 = scmp.eq.s32.totalorder %s15, 1
    %p73 = por %p71, %p72
    %p75 = scmp.ne.s32.totalorder %s60, %s74
    %p76 = scmp.eq.s32.totalorder %s15, 0
    %p77 = por %p75, %p76
    %s79 = sadd.s32 %s78, 1
    %p82 = scmp.eq.s32.totalorder %s9, 1
    %p83 = scmp.ne.s32.totalorder %s78, %s80
    %p84 = scmp.eq.s32.totalorder %s9, 0
    %p85 = por %p83, %p84
    %p86 = scmp.ne.s32.totalorder %s78, %s80
    %p87 = scmp.eq.s32.totalorder %s14, 1
    %p88 = por %p86, %p87
    %p89 = scmp.ne.s32.totalorder %s80, %s81
    %p90 = scmp.eq.s32.totalorder %s14, 0
    %p91 = por %p89, %p90
    %p92 = scmp.ne.s32.totalorder %s80, %s81
    %p93 = scmp.eq.s32.totalorder %s15, 1
    %p94 = por %p92, %p93
    %p96 = scmp.ne.s32.totalorder %s81, %s95
    %p97 = scmp.eq.s32.totalorder %s15, 0
    %p98 = por %p96, %p97
    %s99 = ssub.s32 %s16, %s28
    %s100 = ssub.s32 %s17, %s24
    %s101 = sor.u32 %s99, %s100
    %p102 = scmp.eq.s32.totalorder %s101, 0
    %s104 = sadd.s32 %s103, 1
    %s105 = scalar_select %p102, %s103, %s104
    %p108 = pneg %p102
    %p109 = scmp.eq.s32.totalorder %s9, 1
    %p110 = por %p108, %p109
    %p111 = scmp.ne.s32.totalorder %s103, %s106
    %p112 = scmp.eq.s32.totalorder %s9, 0
    %p113 = por %p111, %p112
    %p114 = scmp.ne.s32.totalorder %s103, %s106
    %p115 = scmp.eq.s32.totalorder %s14, 1
    %p116 = por %p114, %p115
    %p117 = scmp.ne.s32.totalorder %s106, %s107
    %p118 = scmp.eq.s32.totalorder %s14, 0
    %p119 = por %p117, %p118
    %p120 = scmp.ne.s32.totalorder %s106, %s107
    %p121 = scmp.eq.s32.totalorder %s15, 1
    %p122 = por %p120, %p121
    %p124 = scmp.ne.s32.totalorder %s107, %s123
    %p125 = scmp.eq.s32.totalorder %s15, 0
    %p126 = por %p124, %p125
    %p127 = scmp.le.s32.totalorder 1, %s9
    %p128 = scmp.lt.s32.totalorder %s9, 3
    %p129 = pnand %p127, %p128
    %p130 = pneg %p129
    // Predicated region
    $region9: #{conv_bn_relu.1} parent=5 // pred_check
      _
    $region10: #{conv_bn_relu.1} parent=5 // pred_check_branch
      %132 = sbr.rel (%p129) target = $region12
    $region11: #{conv_bn_relu.1} parent=5 // pred_region
      %s133 = ssub.s32 %s9, 1
      // Predicated region
      $region13: #{conv_bn_relu.1} parent=11 // pred_check
        %p134 = pneg %p70
      $region14: #{conv_bn_relu.1} parent=11 // pred_check_branch
        %136 = sbr.rel (%p134) target = $region16
      $region15: #{conv_bn_relu.1} parent=11 // pred_region
        _
      $region16: #{conv_bn_relu.1} parent=11 // pred_fallthru
        _
      // Predicated region
      $region17: #{conv_bn_relu.1} parent=11 // pred_check
        %p137 = pneg %p91
      $region18: #{conv_bn_relu.1} parent=11 // pred_check_branch
        %139 = sbr.rel (%p137) target = $region20
      $region19: #{conv_bn_relu.1} parent=11 // pred_region
        _
      $region20: #{conv_bn_relu.1} parent=11 // pred_fallthru
        _
    $region12: #{conv_bn_relu.1} parent=5 // pred_fallthru
      _
    %p140 = scmp.lt.s32.totalorder %s9, 2
    // Predicated region
    $region21: #{conv_bn_relu.1} parent=5 // pred_check
      %p141 = pneg %p140
    $region22: #{conv_bn_relu.1} parent=5 // pred_check_branch
      %143 = sbr.rel (%p141) target = $region24
    $region23: #{conv_bn_relu.1} parent=5 // pred_region
      // Predicated region
      $region25: #{conv_bn_relu.1} parent=23 // pred_check
        %p144 = pneg %p43
      $region26: #{conv_bn_relu.1} parent=23 // pred_check_branch
        %146 = sbr.rel (%p144) target = $region28
      $region27: #{conv_bn_relu.1} parent=23 // pred_region
        %s147 = smul.u32 2, %s17
        %p148 = scmp.lt.s32.totalorder %s16, 1
        %s149 = scalar_select %p148, %s16, 1
        %p150 = scmp.lt.s32.totalorder %s147, 1
        %s151 = scalar_select %p150, %s147, 1
        %s152 = smul.addr %s149, 10
        %s153 = sadd.s32 %s151, %s152
        %s154 = smul.addr %s153, 4
        %s155 = scalar_lea.vmem %s0, %s154
        %s156 = smul.u32 2, %s17
      $region28: #{conv_bn_relu.1} parent=23 // pred_fallthru
        _
    $region24: #{conv_bn_relu.1} parent=5 // pred_fallthru
      _
    %p157 = scmp.le.s32.totalorder 1, %s9
    %p158 = scmp.lt.s32.totalorder %s9, 3
    %p159 = pnand %p157, %p158
    %p160 = pneg %p159
    // Predicated region
    $region29: #{conv_bn_relu.1} parent=5 // pred_check
      _
    $region30: #{conv_bn_relu.1} parent=5 // pred_check_branch
      %162 = sbr.rel (%p159) target = $region32
    $region31: #{conv_bn_relu.1} parent=5 // pred_region
      %s163 = ssub.s32 %s9, 1
      %s164 = smul.u32 2, %s19
      %p165 = scmp.lt.s32.totalorder %s18, 1
      %s166 = scalar_select %p165, %s18, 1
      %p167 = scmp.lt.s32.totalorder %s164, 1
      %s168 = scalar_select %p167, %s164, 1
      %s169 = smul.addr %s166, 10
      %s170 = sadd.s32 %s168, %s169
      %s171 = smul.addr %s170, 4
      %s172 = scalar_lea.vmem %s0, %s171
      %p173 = pneg %p49
      %p174 = pneg %p46
      %p175 = pneg %p70
      %p176 = pneg %p67
      %p177 = pneg %p91
      %p178 = pneg %p88
      %p179 = pneg %p119
      %p180 = pneg %p116
      %s181 = smul.u32 2, %s19
      %p182 = scmp.lt.s32.totalorder %s18, 1
      %s183 = scalar_select %p182, %s18, 1
      %p184 = scmp.lt.s32.totalorder %s181, 1
      %s185 = scalar_select %p184, %s181, 1
      %s186 = smul.addr %s183, 2
      %s187 = sadd.s32 %s185, %s186
      %s188 = smul.addr %s187, 4
      %s189 = scalar_lea.vmem %s3, %s188
      %s190 = smul.u32 2, %s19
      %p191 = scmp.lt.s32.totalorder %s18, 1
      %s192 = scalar_select %p191, %s18, 1
      %p193 = scmp.lt.s32.totalorder %s190, 1
      %s194 = scalar_select %p193, %s190, 1
      %s195 = smul.addr %s192, 10
      %s196 = sadd.s32 %s194, %s195
      %s197 = smul.addr %s196, 4
      %s198 = scalar_lea.vmem %s0, %s197
      %s199 = smul.u32 2, %s19
      %s200 = smul.u32 2, %s19
      %p201 = scmp.lt.s32.totalorder %s18, 1
      %s202 = scalar_select %p201, %s18, 1
      %p203 = scmp.lt.s32.totalorder %s200, 1
      %s204 = scalar_select %p203, %s200, 1
      %s205 = smul.addr %s202, 2
      %s206 = sadd.s32 %s204, %s205
      %s207 = smul.addr %s206, 4
      %s208 = scalar_lea.vmem %s3, %s207
      %s209 = smul.u32 2, %s19
      %v211 = vld [vmem:[%s1] sm:$0xf]
      %v212 = vld [vmem:[%s198] sm:$0xff]
      %v213 = vld [vmem:[%s198 + $0x8] sm:$0xff]
      %v214 = vld [vmem:[%s198 + $0x10] sm:$0xff]
      %v215 = vld [vmem:[%s198 + $0x18] sm:$0xff]
      %v216 = vld [vmem:[%s198 + $0x20] sm:$0x33]
      %v217 = vld [vmem:[%s2] sm:$0xff]
      %219 = vset.pattern.permute.xlu0 0
      %220 = vperm.xlu0 %219, %v217
      %v221 = vpop.permute.xlu0 %220
      %v228 = vunpack.c.l.b16 %v212
      %v229 = vunpack.c.h.b16 %v212
      %v230 = vunpack.c.l.b16 %v213
      %v231 = vunpack.c.h.b16 %v213
      %v232 = vunpack.c.l.b16 %v214
      %v233 = vunpack.c.h.b16 %v214
      %v234 = vunpack.c.l.b16 %v215
      %v235 = vunpack.c.h.b16 %v215
      %v236 = vunpack.c.l.b16 %v216
      %v237 = vunpack.c.h.b16 %v216
      %v238 = vpack.c.b16 %v230, %v228
      %v239 = vpack.c.b16 %v231, %v229
      %v240 = vpack.c.b16 %v234, %v232
      %v241 = vpack.c.b16 %v235, %v233
      %v242 = vpack.c.b16 %v236, %v236
      %v243 = vpack.c.b16 %v237, %v237
      %vm248 = vcmask 293888
      %v250 = vsel %vm248, %v211, 0
      %vm252 = vcmask 1041408
      %v254 = vsel %vm252, %v242, 0
      %v257 = vsel %vm252, %v243, 0
      %259 = vmatprep.subr.bf16.mxu0 %v239
      %260 = vmatpush1.bf16.msra.mxu0 %v238
      %261 = vmatprep.subr.bf16.mxu0 %v241
      %262 = vmatpush1.bf16.msra.mxu0 %v240
      %263 = vmatprep.subr.bf16.mxu0 %v257
      %264 = vmatpush1.bf16.msra.mxu0 %v254
      %265 = vmatprep.subr.bf16.mxu0 0
      %266 = vmatpush1.bf16.msra.mxu0 0
      %267 = vmatprep.subr.bf16.mxu0 0
      %268 = vmatpush1.bf16.msra.mxu0 0
      %269 = vmatprep.subr.bf16.mxu0 0
      %270 = vmatpush1.bf16.msra.mxu0 0
      %271 = vmatprep.subr.bf16.mxu0 0
      %272 = vmatpush1.bf16.msra.mxu0 0
      %273 = vmatprep.subr.bf16.mxu0 0
      %274 = vmatpush1.bf16.msra.mxu0 0
      %275 = vmatprep.subr.bf16.mxu0 0
      %276 = vmatpush1.bf16.msra.mxu0 0
      %277 = vmatprep.subr.bf16.mxu0 0
      %278 = vmatpush1.bf16.msra.mxu0 0
      %279 = vmatprep.subr.bf16.mxu0 0
      %280 = vmatpush1.bf16.msra.mxu0 0
      %281 = vmatprep.subr.bf16.mxu0 0
      %282 = vmatpush1.bf16.msra.mxu0 0
      %283 = vmatprep.subr.bf16.mxu0 0
      %284 = vmatpush1.bf16.msra.mxu0 0
      %285 = vmatprep.subr.bf16.mxu0 0
      %286 = vmatpush1.bf16.msra.mxu0 0
      %287 = vmatprep.subr.bf16.mxu0 0
      %288 = vmatpush1.bf16.msra.mxu0 0
      %289 = vmatprep.subr.bf16.mxu0 0
      %290 = vmatpush1.bf16.msra.mxu0 0
      %291 = vmatprep.mubr.bf16.mxu0 0
      %292 = vmatmul.mubr.bf16.gmra.mrb[0].mxu0 %v250
      %v293 = vpop.f32.mrb[0].mxu0
      %v294 = vadd.f32 %v221, %v293
      %v295 = vpop.f32.mrb[0].mxu0
      %v296 = vadd.f32 %v221, %v295
      %v297 = vpop.f32.mrb[0].mxu0
      %v298 = vpop.f32.mrb[0].mxu0
      %299 = vdwg.mxu0
      %v300 = vmax.f32 %v294, 0.0
      %v301 = vmax.f32 %v296, 0.0
      %v302 = vpack.c.bf16 %v300, %v300
      %v303 = vpack.c.bf16 %v301, %v301
      %v306 = vunpack.c.l.b16 %v302
      %v307 = vunpack.c.l.b16 %v303
      %v308 = vpack.c.b16 %v307, %v306
      %310 = vst [vmem:[%s208] sm:$0xff] %v308
      %s311 = smul.u32 2, %s19
      %p312 = scmp.lt.s32.totalorder %s18, 1
      %s313 = scalar_select %p312, %s18, 1
      %p314 = scmp.lt.s32.totalorder %s311, 1
      %s315 = scalar_select %p314, %s311, 1
      %s316 = smul.addr %s313, 2
      %s317 = sadd.s32 %s315, %s316
      %s318 = smul.addr %s317, 4
      %s319 = scalar_lea.vmem %s3, %s318
      // Predicated region
      $region33: #{conv_bn_relu.1} parent=31 // pred_check
        %p320 = pneg %p116
      $region34: #{conv_bn_relu.1} parent=31 // pred_check_branch
        %322 = sbr.rel (%p320) target = $region36
      $region35: #{conv_bn_relu.1} parent=31 // pred_region
        %s323 = smul.u32 2, %s19
      $region36: #{conv_bn_relu.1} parent=31 // pred_fallthru
        _
    $region32: #{conv_bn_relu.1} parent=5 // pred_fallthru
      _
    %p324 = scmp.le.s32.totalorder 2, %s9
    // Predicated region
    $region37: #{conv_bn_relu.1} parent=5 // pred_check
      %p325 = pneg %p324
    $region38: #{conv_bn_relu.1} parent=5 // pred_check_branch
      %327 = sbr.rel (%p325) target = $region40
    $region39: #{conv_bn_relu.1} parent=5 // pred_region
      %s328 = ssub.s32 %s9, 2
      // Predicated region
      $region41: #{conv_bn_relu.1} parent=39 // pred_check
        %p329 = pneg %p122
      $region42: #{conv_bn_relu.1} parent=39 // pred_check_branch
        %331 = sbr.rel (%p329) target = $region44
      $region43: #{conv_bn_relu.1} parent=39 // pred_region
        %s332 = smul.u32 2, %s21
        %p333 = scmp.lt.s32.totalorder %s20, 1
        %s334 = scalar_select %p333, %s20, 1
        %p335 = scmp.lt.s32.totalorder %s332, 1
        %s336 = scalar_select %p335, %s332, 1
        %s337 = smul.addr %s334, 2
        %s338 = sadd.s32 %s336, %s337
        %s339 = smul.addr %s338, 4
        %s340 = scalar_lea.vmem %s3, %s339
      $region44: #{conv_bn_relu.1} parent=39 // pred_fallthru
        _
    $region40: #{conv_bn_relu.1} parent=5 // pred_fallthru
      _
  $region6: #{conv_bn_relu.1} parent=0 // loop_footer
    %s13 = sadd.s32 1, %s9
  $region7: #{conv_bn_relu.1} parent=0 // loop_footer_branch
    %8 = sbr.rel target = $region3
  $region8: #{conv_bn_relu.1} parent=0 // loop_exit
    _

</llo_original>
